<compile_context>
chip_gen: v6e
topology: v6e:2x2x1
jax: 0.10.0
libtpu: 0.0.40
codegen_flags: <defaults>
</compile_context>

<pallas_src>
import jax
import jax.numpy as jnp
from jax import lax
from jax.experimental import pallas as pl
from jax.experimental.pallas import tpu as pltpu


def _swin_head_kernel(x_ref, w_ref, b_ref, o_ref, acc_ref):
    """One (batch-tile i, pooling-tile j) grid step.

    x_ref:   (TB, TH, W, C) feature tile (channels lane-dense), f32 or bf16
    w_ref:   (1, C)  f32    classifier weight row with 1/(H*W) folded in
    b_ref:   (1,)    f32    classifier bias (SMEM scalar)
    o_ref:   (TB, 1) f32    logits (same output block across the H axis)
    acc_ref: (TB, C) f32    per-channel partial sums (persists across H axis)
    """
    j = pl.program_id(1)

    @pl.when(j == 0)
    def _init():
        acc_ref[...] = jnp.zeros_like(acc_ref)

    th = x_ref.shape[1]

    # Global-average-pool partial sums.  The (bf16 ->) f32 upcast is fused
    # into a per-row reduction so only a (TB, W, C) f32 slab is ever live,
    # never a full f32 copy of the (TB, TH, W, C) tile.
    def row_sum(h, acc):
        return acc + jnp.sum(x_ref[:, h, :, :].astype(jnp.float32), axis=1)

    acc_ref[...] += lax.fori_loop(
        0, th, row_sum, jnp.zeros(acc_ref.shape, jnp.float32),
        unroll=(th <= 8))

    @pl.when(j == pl.num_programs(1) - 1)
    def _finalize():
        # Dropout: eval-mode identity (nn.Dropout is a no-op in .eval()).
        # Linear(C, 1): lane-dense VPU multiply + XLU lane reduce (no MXU).
        logits = jnp.sum(acc_ref[...] * w_ref[...], axis=-1, keepdims=True)
        o_ref[...] = logits + b_ref[0]


def _vmem_capacity_bytes():
    # Physical VMEM per TensorCore: 128 MiB (v5e/v6e), 64 MiB (v7x).
    try:
        return int(pltpu.get_tpu_info().vmem_capacity_bytes)
    except Exception:
        return 64 << 20  # conservative (v7x-sized) fallback


def _largest_divisor_leq(n, cap, valid=None):
    cap = min(n, max(0, cap))
    for d in range(cap, 0, -1):
        if n % d == 0 and (valid is None or valid(d)):
            return d
    return None


def _choose_tiles(B, H, W, C, itemsize, tile_budget_bytes):
    """Pick (tb, th): batch-tile and pooling(H)-tile sizes.

    Constraints: tb | B, th | H, and (tb % 8 == 0 or tb == B) so the (tb, 1)
    output block satisfies the (8, 128) rule.  Targets: one input tile (one
    pipeline buffer) <= tile_budget_bytes, and >= 2 total grid steps whenever
    possible (pipeline overlap + v7x two-TensorCore sharding on the batch
    axis).
    """
    per_row = W * C * itemsize            # one H-row of one sample
    per_sample = H * per_row

    def tb_ok(d):
        return d % 8 == 0 or d == B

    # Regime 1: one-or-more whole samples per tile (full H).
    if per_sample <= tile_budget_bytes:
        max_tb = max(1, tile_budget_bytes // per_sample)
        # Leave >= 2 batch tiles for megacore when the batch is big enough.
        cap = max_tb if B < 16 else min(max_tb, max(8, B // 2))
        tb = (_largest_divisor_leq(B, cap, tb_ok)
              or _largest_divisor_leq(B, max_tb, tb_ok))
        if tb is not None:
            th = H
            if B // tb == 1 and H > 1:
                # Single batch tile: split the pooling axis so the pipeline
                # still has >= 2 steps.
                th = _largest_divisor_leq(H, H // 2) or H
            return tb, th

    # Regime 2: a single sample's feature map exceeds the tile budget (or no
    # aligned batch tile fits): tile the pooling axis as well.
    best = None
    for d in range(B, 0, -1):
        if B % d or not tb_ok(d):
            continue
        th_cap = tile_budget_bytes // (d * per_row)
        if th_cap < 1:
            continue
        th = _largest_divisor_leq(H, th_cap)
        size = d * th * per_row
        if best is None or size > best[2]:
            best = (d, th, size)
    if best is not None:
        return best[0], best[1]

    # TODO(synk): even a single (tb, 1, W, C) slab exceeds the budget; fall
    # back to the smallest aligned tile and rely on vmem_limit_bytes.
    return (8 if B % 8 == 0 else B), 1


def swin_binary_classifier_head(feats, weight, bias, *, vmem_budget_bytes=None):
    """Swin binary-classifier head.

    feats:  (B, H, W, C)  float32 or bfloat16 -- forward_features output (NHWC)
    weight: (1, C)        float32             -- nn.Linear(C, 1) weight
    bias:   (1,)          float32             -- nn.Linear(C, 1) bias
    returns (B, 1) float32 logits
    """
    B, H, W, C = feats.shape
    itemsize = jnp.dtype(feats.dtype).itemsize

    # Fold the 1/(H*W) mean scale into the lane-dense weight row on the host;
    # the kernel then only does sum-reduce + multiply + lane reduce.
    w_row = weight.reshape(1, C).astype(jnp.float32) / jnp.float32(H * W)
    b_vec = bias.reshape(1).astype(jnp.float32)

    # ---- generation-aware VMEM budget for the double-buffered feature tiles.
    cap = _vmem_capacity_bytes()
    if vmem_budget_bytes is None:
        # ~40% of physical VMEM, clamped to [8 MiB, 32 MiB]
        # (v5e/v6e -> 32 MiB => 16 MiB tiles, v7x -> ~25 MiB => ~12 MiB tiles).
        vmem_budget_bytes = int(min(32 << 20, max(8 << 20, (cap * 2) // 5)))

    tile_budget = max(1, vmem_budget_bytes // 2)   # per pipeline buffer
    tb, th = _choose_tiles(B, H, W, C, itemsize, tile_budget)
    grid = (B // tb, H // th)

    # ---- explicit VMEM limit from the actual buffer math (padded layouts).
    def rup(x, m):
        return ((x + m - 1) // m) * m

    sub = 8 * 4 // itemsize                                     # sublane rows
    tile_pad_bytes = tb * th * rup(W, sub) * rup(C, 128) * itemsize
    row_temp_bytes = tb * rup(W, 8) * rup(C, 128) * 4           # fori f32 slab
    acc_bytes = rup(tb, 8) * rup(C, 128) * 4                    # (tb, C) scratch
    vmem_limit = 2 * tile_pad_bytes + row_temp_bytes + acc_bytes + (6 << 20)
    vmem_limit = int(min(max(vmem_limit, 16 << 20),
                         max(cap - (4 << 20), 16 << 20)))

    cost = pl.CostEstimate(
        flops=B * H * W * C + 2 * B * C,
        transcendentals=0,
        bytes_accessed=B * H * W * C * itemsize + C * 4 + 4 + B * 4,
    )

    return pl.pallas_call(
        _swin_head_kernel,
        out_shape=jax.ShapeDtypeStruct((B, 1), jnp.float32),
        grid_spec=pltpu.PrefetchScalarGridSpec(
            num_scalar_prefetch=0,
            grid=grid,
            in_specs=[
                pl.BlockSpec((tb, th, W, C), lambda i, j: (i, j, 0, 0)),
                pl.BlockSpec((1, C), lambda i, j: (0, 0)),
                pl.BlockSpec(memory_space=pltpu.SMEM),      # bias scalar
            ],
            out_specs=pl.BlockSpec((tb, 1), lambda i, j: (i, 0)),
            scratch_shapes=[pltpu.VMEM((tb, C), jnp.float32)],
        ),
        compiler_params=pltpu.CompilerParams(
            dimension_semantics=("parallel", "arbitrary"),
            vmem_limit_bytes=vmem_limit,
        ),
        cost_estimate=cost,
    )(feats, w_row, b_vec)


if __name__ == "__main__":
    # Small shapes consistent with the forward pass:
    #   batch=2, spatial=8x8 feature map, num_features=128 channels.
    B, H, W, C = 2, 8, 8, 128

    key = jax.random.PRNGKey(0)
    k_x, k_w, k_b = jax.random.split(key, 3)

    # Deterministic synthetic "forward_features" output (NHWC) + head params.
    feats = jax.random.normal(k_x, (B, H, W, C), dtype=jnp.float32)
    bound = 1.0 / jnp.sqrt(jnp.float32(C))   # nn.Linear(C, 1) init bound
    w = jax.random.uniform(k_w, (1, C), jnp.float32, -bound, bound)
    b = jax.random.uniform(k_b, (1,), jnp.float32, -bound, bound)

    out = jax.block_until_ready(swin_binary_classifier_head(feats, w, b))
    ref = jnp.mean(feats, axis=(1, 2)) @ w.T + b
    assert out.shape == (B, 1)
    assert jnp.allclose(out, ref, atol=1e-5, rtol=1e-5)

    # bf16 feature path (halved HBM traffic); accumulation stays f32 in-kernel.
    feats16 = feats.astype(jnp.bfloat16)
    out16 = jax.block_until_ready(swin_binary_classifier_head(feats16, w, b))
    ref16 = jnp.mean(feats16.astype(jnp.float32), axis=(1, 2)) @ w.T + b
    assert jnp.allclose(out16, ref16, atol=1e-3, rtol=1e-3)

    print("KERNEL_OK")
</pallas_src>

<mosaic_0001>
module attributes {stable_mosaic.version = 11 : i64} {
  func.func @_swin_head_kernel(%arg0: i32, %arg1: i32, %arg2: memref<2x4x8x128xf32, #tpu.memory_space<vmem>>, %arg3: memref<1x128xf32, #tpu.memory_space<vmem>>, %arg4: memref<1xf32, #tpu.memory_space<smem>>, %arg5: memref<2x1xf32, #tpu.memory_space<vmem>>, %arg6: memref<2x128xf32, #tpu.memory_space<vmem>>) attributes {dimension_semantics = [#tpu.dimension_semantics<parallel>, #tpu.dimension_semantics<arbitrary>], iteration_bounds = array<i64: 1, 2>, scalar_prefetch = 0 : i64, scratch_operands = 1 : i64, tpu.core_type = #tpu.core_type<tc>, window_params = [{transform_indices = @transform_0, window_bounds = array<i64: 2, 4, 8, 128>}, {pipeline_mode = #tpu.pipeline_mode<synchronous>, transform_indices = @transform_1, window_bounds = array<i64: 1, 128>}, {transform_indices = @transform_2, window_bounds = array<i64: 1>}, {transform_indices = @transform_3, window_bounds = array<i64: 2, 1>}]} {
    %c0_i32 = arith.constant 0 : i32
    %0 = arith.cmpi eq, %arg1, %c0_i32 : i32
    %1 = arith.extui %0 : i1 to i32
    %c0_i32_0 = arith.constant 0 : i32
    %2 = arith.cmpi ne, %1, %c0_i32_0 : i32
    scf.if %2 {
      %cst_23 = arith.constant 0.000000e+00 : f32
      %30 = vector.broadcast %cst_23 : f32 to vector<2x128xf32>
      %c0_24 = arith.constant 0 : index
      %c0_25 = arith.constant 0 : index
      %31 = vector.load %arg6[%c0_24, %c0_25] : memref<2x128xf32, #tpu.memory_space<vmem>>, vector<2x128xf32>
      tpu.vector_store %arg6[%c0_24, %c0_25], %30 {strides = array<i32>} : memref<2x128xf32, #tpu.memory_space<vmem>>, vector<2x128xf32>,
    } else {
    }
    %c0 = arith.constant 0 : index
    %c0_1 = arith.constant 0 : index
    %3 = vector.load %arg6[%c0, %c0_1] : memref<2x128xf32, #tpu.memory_space<vmem>>, vector<2x128xf32>
    %cst = arith.constant 0.000000e+00 : f32
    %4 = vector.broadcast %cst : f32 to vector<2x128xf32>
    %c0_i32_2 = arith.constant 0 : i32
    %c0_3 = arith.constant 0 : index
    %5 = arith.index_cast %c0_i32_2 : i32 to index
    %c0_4 = arith.constant 0 : index
    %c0_5 = arith.constant 0 : index
    %6 = vector.load %arg2[%c0_3, %5, %c0_4, %c0_5] : memref<2x4x8x128xf32, #tpu.memory_space<vmem>>, vector<2x1x8x128xf32>
    %7 = vector.shape_cast %6 : vector<2x1x8x128xf32> to vector<2x8x128xf32>
    %cst_6 = arith.constant dense<0.000000e+00> : vector<2x128xf32>
    %8 = vector.multi_reduction <add>, %7, %cst_6 [1] : vector<2x8x128xf32> to vector<2x128xf32>
    %9 = arith.addf %4, %8 : vector<2x128xf32>
    %c1_i32 = arith.constant 1 : i32
    %c0_7 = arith.constant 0 : index
    %10 = arith.index_cast %c1_i32 : i32 to index
    %c0_8 = arith.constant 0 : index
    %c0_9 = arith.constant 0 : index
    %11 = vector.load %arg2[%c0_7, %10, %c0_8, %c0_9] : memref<2x4x8x128xf32, #tpu.memory_space<vmem>>, vector<2x1x8x128xf32>
    %12 = vector.shape_cast %11 : vector<2x1x8x128xf32> to vector<2x8x128xf32>
    %cst_10 = arith.constant dense<0.000000e+00> : vector<2x128xf32>
    %13 = vector.multi_reduction <add>, %12, %cst_10 [1] : vector<2x8x128xf32> to vector<2x128xf32>
    %14 = arith.addf %9, %13 : vector<2x128xf32>
    %c2_i32 = arith.constant 2 : i32
    %c0_11 = arith.constant 0 : index
    %15 = arith.index_cast %c2_i32 : i32 to index
    %c0_12 = arith.constant 0 : index
    %c0_13 = arith.constant 0 : index
    %16 = vector.load %arg2[%c0_11, %15, %c0_12, %c0_13] : memref<2x4x8x128xf32, #tpu.memory_space<vmem>>, vector<2x1x8x128xf32>
    %17 = vector.shape_cast %16 : vector<2x1x8x128xf32> to vector<2x8x128xf32>
    %cst_14 = arith.constant dense<0.000000e+00> : vector<2x128xf32>
    %18 = vector.multi_reduction <add>, %17, %cst_14 [1] : vector<2x8x128xf32> to vector<2x128xf32>
    %19 = arith.addf %14, %18 : vector<2x128xf32>
    %c3_i32 = arith.constant 3 : i32
    %c0_15 = arith.constant 0 : index
    %20 = arith.index_cast %c3_i32 : i32 to index
    %c0_16 = arith.constant 0 : index
    %c0_17 = arith.constant 0 : index
    %21 = vector.load %arg2[%c0_15, %20, %c0_16, %c0_17] : memref<2x4x8x128xf32, #tpu.memory_space<vmem>>, vector<2x1x8x128xf32>
    %22 = vector.shape_cast %21 : vector<2x1x8x128xf32> to vector<2x8x128xf32>
    %cst_18 = arith.constant dense<0.000000e+00> : vector<2x128xf32>
    %23 = vector.multi_reduction <add>, %22, %cst_18 [1] : vector<2x8x128xf32> to vector<2x128xf32>
    %24 = arith.addf %19, %23 : vector<2x128xf32>
    %c4_i32 = arith.constant 4 : i32
    %25 = arith.addf %3, %24 : vector<2x128xf32>
    %c0_19 = arith.constant 0 : index
    %c0_20 = arith.constant 0 : index
    %26 = vector.load %arg6[%c0_19, %c0_20] : memref<2x128xf32, #tpu.memory_space<vmem>>, vector<2x128xf32>
    tpu.vector_store %arg6[%c0_19, %c0_20], %25 {strides = array<i32>} : memref<2x128xf32, #tpu.memory_space<vmem>>, vector<2x128xf32>,
    %c1_i32_21 = arith.constant 1 : i32
    %27 = arith.cmpi eq, %arg1, %c1_i32_21 : i32
    %28 = arith.extui %27 : i1 to i32
    %c0_i32_22 = arith.constant 0 : i32
    %29 = arith.cmpi ne, %28, %c0_i32_22 : i32
    scf.if %29 {
      %c0_23 = arith.constant 0 : index
      %c0_24 = arith.constant 0 : index
      %30 = vector.load %arg6[%c0_23, %c0_24] : memref<2x128xf32, #tpu.memory_space<vmem>>, vector<2x128xf32>
      %c0_25 = arith.constant 0 : index
      %c0_26 = arith.constant 0 : index
      %31 = vector.load %arg3[%c0_25, %c0_26] : memref<1x128xf32, #tpu.memory_space<vmem>>, vector<1x128xf32>
      %32 = vector.broadcast %31 : vector<1x128xf32> to vector<2x128xf32>
      %33 = arith.mulf %30, %32 : vector<2x128xf32>
      %cst_27 = arith.constant dense<0.000000e+00> : vector<2xf32>
      %34 = vector.multi_reduction <add>, %33, %cst_27 [1] : vector<2x128xf32> to vector<2xf32>
      %35 = vector.shape_cast %34 : vector<2xf32> to vector<2x1xf32>
      %c0_28 = arith.constant 0 : index
      %36 = memref.load %arg4[%c0_28] : memref<1xf32, #tpu.memory_space<smem>>
      %37 = vector.broadcast %36 : f32 to vector<2x1xf32>
      %38 = arith.addf %35, %37 : vector<2x1xf32>
      %c0_29 = arith.constant 0 : index
      %c0_30 = arith.constant 0 : index
      %39 = vector.load %arg5[%c0_29, %c0_30] : memref<2x1xf32, #tpu.memory_space<vmem>>, vector<2x1xf32>
      tpu.vector_store %arg5[%c0_29, %c0_30], %38 {strides = array<i32>} : memref<2x1xf32, #tpu.memory_space<vmem>>, vector<2x1xf32>,
    } else {
    }
    return
  }
  func.func @transform_0(%arg0: i32, %arg1: i32) -> (i32, i32, i32, i32) {
    %c0_i32 = arith.constant 0 : i32
    %c0_i32_0 = arith.constant 0 : i32
    %c0_i32_1 = arith.constant 0 : i32
    return %arg0, %arg1, %c0_i32, %c0_i32_0 : i32, i32, i32, i32
  }
  func.func @transform_1(%arg0: i32, %arg1: i32) -> (i32, i32) {
    %c0_i32 = arith.constant 0 : i32
    %c0_i32_0 = arith.constant 0 : i32
    %c0_i32_1 = arith.constant 0 : i32
    return %c0_i32, %c0_i32_0 : i32, i32
  }
  func.func @transform_2(%arg0: i32, %arg1: i32) -> i32 {
    %c0_i32 = arith.constant 0 : i32
    %c0_i32_0 = arith.constant 0 : i32
    return %c0_i32 : i32
  }
  func.func @transform_3(%arg0: i32, %arg1: i32) -> (i32, i32) {
    %c0_i32 = arith.constant 0 : i32
    %c0_i32_0 = arith.constant 0 : i32
    return %arg0, %c0_i32 : i32, i32
  }
}

</mosaic_0001>

<llo_original>
// kernel: tpu_custom_call.1
$region0: #{tpu_custom_call.1}
  #allocation0 [shape = 'u32[]', space=smem, size = 0x4, offset = 0x4, fixed_abs, tag = 'smem constant byte address 0x4 - core index']
  #allocation1 [shape = 'u32[144,128]{1,0:T(1,128)}', space=vmem, size = 0x12000, scoped, tag = 'internal scratch']
  #allocation2 [shape = 'f32[2,128]{1,0:T(2,128)}', space=vmem, size = 0x400, scoped, tag = 'scratch operand']
  #allocation3 [shape = 'f32[1]{0:T(128)S(6)}', space=smem, size = 0x200, scoped, tag = 'scoped memory for tpu_custom_call.1']
  #allocation6 [shape = 's32[]', space=sflag, size = 0x4, offset = 0, fixed_abs, tag = 'sflag constant byte address 0x0 - dummy sync flag']
  %s0 = inlined_call_operand.hbm [shape: f32[2,8,8,128], index: 0, kind: input, shape index: {}]
  %s1 = inlined_call_operand.vmem [shape: f32[1,128], index: 1, kind: input, shape index: {}]
  %s2 = inlined_call_operand.<no memory space> [shape: f32[1], index: 2, kind: input, shape index: {}]
  %s3 = inlined_call_operand.vmem [shape: f32[2,1], index: 3, kind: output, shape index: {}]
  %s4 = sld [smem:[#allocation0]]
  $region57: #{tpu_custom_call.1} parent=0
    _
  %s6 = ssub.s32 1, %s4
  %s7 = scalar_select 0, %s6, %s4
  %8 = sst [smem:[#allocation3]] %s2
  $region1: #{tpu_custom_call.1} parent=0
    #allocation4 [shape = 'u8[65536]{0}', space=vmem, size = 0x10000, scoped, tag = 'input window, operand 0']
    #allocation5 [shape = 's32[2]{0}', space=sflag, size = 0x8, scoped, tag = 'scoped memory for tpu_custom_call.1']
    %9 = vsyncpa [#allocation5], 0
    %s10 = scalar_lea.sflag [#allocation5], 1
    %11 = vsyncpa %s10, 0
    loop: start=0, step=1, limit=4
    $region2: #{tpu_custom_call.1} parent=1 // loop_pre_header
      _
    $region3: #{tpu_custom_call.1} parent=1 // loop_header
      %s13 = sphi 0, %s17
      %p14 = scmp.ge.s32.totalorder %s13, 4
      %s20 = sphi 0, %s32
      %s21 = sphi 0, %s28
      %s22 = sphi 0, %s20
      %s23 = sphi 0, %s21
      %s24 = sphi 0, %s22
      %s25 = sphi 0, %s23
      %s37 = sphi 0, %s39
      %s40 = sphi 0, %s37
      %s41 = sphi 0, %s40
      %s57 = sphi 0, %s41
      %s61 = sphi 0, %s61
      %s63 = sphi 0, %s61
      %s64 = sphi 0, %s63
      %s78 = sphi 0, %s64
      %s82 = sphi 0, %s82
      %s84 = sphi 0, %s82
      %s85 = sphi 0, %s84
      %s99 = sphi 0, %s85
      %s105 = sphi 0, %s107
      %s108 = sphi 0, %s105
      %s109 = sphi 0, %s108
      %s125 = sphi 0, %s109
    $region4: #{tpu_custom_call.1} parent=1 // loop_header_branch
      %16 = sbr.rel (%p14) target = $region8
    $region5: #{tpu_custom_call.1} parent=1 // loop_body
      %s18 = ssub.s32 %s13, 1
      %s19 = ssub.s32 %s13, 2
      %s26 = sadd.s32 1, %s21
      %p27 = scmp.ge.s32.totalorder %s26, 2
      %s28 = scalar_select %p27, 0, %s26
      %s29 = sadd.s32 1, %s20
      %s30 = scalar_select %p27, %s29, %s20
      %p31 = scmp.ge.s32.totalorder %s30, 1
      %s32 = scalar_select %p31, 0, %s30
      %s33 = ssub.s32 %s20, %s32
      %s34 = ssub.s32 %s21, %s28
      %s35 = sor.u32 %s33, %s34
      %p36 = scmp.eq.s32.totalorder %s35, 0
      %s38 = sadd.s32 %s37, 1
      %s39 = scalar_select %p36, %s37, %s38
      %p42 = pneg %p36
      %p43 = scmp.eq.s32.totalorder %s13, 1
      %p44 = por %p42, %p43
      %p45 = scmp.ne.s32.totalorder %s37, %s40
      %p46 = scmp.eq.s32.totalorder %s13, 0
      %p47 = por %p45, %p46
      %p48 = scmp.ne.s32.totalorder %s37, %s40
      %p49 = scmp.eq.s32.totalorder %s18, 1
      %p50 = por %p48, %p49
      %p51 = scmp.ne.s32.totalorder %s40, %s41
      %p52 = scmp.eq.s32.totalorder %s18, 0
      %p53 = por %p51, %p52
      %p54 = scmp.ne.s32.totalorder %s40, %s41
      %p55 = scmp.eq.s32.totalorder %s19, 1
      %p56 = por %p54, %p55
      %p58 = scmp.ne.s32.totalorder %s41, %s57
      %p59 = scmp.eq.s32.totalorder %s19, 0
      %p60 = por %p58, %p59
      %s62 = sadd.s32 %s61, 1
      %p65 = scmp.eq.s32.totalorder %s13, 1
      %p66 = scmp.ne.s32.totalorder %s61, %s63
      %p67 = scmp.eq.s32.totalorder %s13, 0
      %p68 = por %p66, %p67
      %p69 = scmp.ne.s32.totalorder %s61, %s63
      %p70 = scmp.eq.s32.totalorder %s18, 1
      %p71 = por %p69, %p70
      %p72 = scmp.ne.s32.totalorder %s63, %s64
      %p73 = scmp.eq.s32.totalorder %s18, 0
      %p74 = por %p72, %p73
      %p75 = scmp.ne.s32.totalorder %s63, %s64
      %p76 = scmp.eq.s32.totalorder %s19, 1
      %p77 = por %p75, %p76
      %p79 = scmp.ne.s32.totalorder %s64, %s78
      %p80 = scmp.eq.s32.totalorder %s19, 0
      %p81 = por %p79, %p80
      %s83 = sadd.s32 %s82, 1
      %p86 = scmp.eq.s32.totalorder %s13, 1
      %p87 = scmp.ne.s32.totalorder %s82, %s84
      %p88 = scmp.eq.s32.totalorder %s13, 0
      %p89 = por %p87, %p88
      %p90 = scmp.ne.s32.totalorder %s82, %s84
      %p91 = scmp.eq.s32.totalorder %s18, 1
      %p92 = por %p90, %p91
      %p93 = scmp.ne.s32.totalorder %s84, %s85
      %p94 = scmp.eq.s32.totalorder %s18, 0
      %p95 = por %p93, %p94
      %p96 = scmp.ne.s32.totalorder %s84, %s85
      %p97 = scmp.eq.s32.totalorder %s19, 1
      %p98 = por %p96, %p97
      %p100 = scmp.ne.s32.totalorder %s85, %s99
      %p101 = scmp.eq.s32.totalorder %s19, 0
      %p102 = por %p100, %p101
      %s103 = ssub.s32 %s20, %s32
      %p104 = scmp.eq.s32.totalorder %s103, 0
      %s106 = sadd.s32 %s105, 1
      %s107 = scalar_select %p104, %s105, %s106
      %p110 = pneg %p104
      %p111 = scmp.eq.s32.totalorder %s13, 1
      %p112 = por %p110, %p111
      %p113 = scmp.ne.s32.totalorder %s105, %s108
      %p114 = scmp.eq.s32.totalorder %s13, 0
      %p115 = por %p113, %p114
      %p116 = scmp.ne.s32.totalorder %s105, %s108
      %p117 = scmp.eq.s32.totalorder %s18, 1
      %p118 = por %p116, %p117
      %p119 = scmp.ne.s32.totalorder %s108, %s109
      %p120 = scmp.eq.s32.totalorder %s18, 0
      %p121 = por %p119, %p120
      %p122 = scmp.ne.s32.totalorder %s108, %s109
      %p123 = scmp.eq.s32.totalorder %s19, 1
      %p124 = por %p122, %p123
      %p126 = scmp.ne.s32.totalorder %s109, %s125
      %p127 = scmp.eq.s32.totalorder %s19, 0
      %p128 = por %p126, %p127
      %p129 = scmp.le.s32.totalorder 1, %s13
      %p130 = scmp.lt.s32.totalorder %s13, 3
      %p131 = pnand %p129, %p130
      %p132 = pneg %p131
      // Predicated region
      $region9: #{tpu_custom_call.1} parent=5 // pred_check
        _
      $region10: #{tpu_custom_call.1} parent=5 // pred_check_branch
        %134 = sbr.rel (%p131) target = $region12
      $region11: #{tpu_custom_call.1} parent=5 // pred_region
        %s135 = ssub.s32 %s13, 1
        // Predicated region
        $region13: #{tpu_custom_call.1} parent=11 // pred_check
          %p136 = pneg %p74
        $region14: #{tpu_custom_call.1} parent=11 // pred_check_branch
          %138 = sbr.rel (%p136) target = $region16
        $region15: #{tpu_custom_call.1} parent=11 // pred_region
          _
        $region16: #{tpu_custom_call.1} parent=11 // pred_fallthru
          _
        // Predicated region
        $region17: #{tpu_custom_call.1} parent=11 // pred_check
          %p139 = pneg %p95
        $region18: #{tpu_custom_call.1} parent=11 // pred_check_branch
          %141 = sbr.rel (%p139) target = $region20
        $region19: #{tpu_custom_call.1} parent=11 // pred_region
          _
        $region20: #{tpu_custom_call.1} parent=11 // pred_fallthru
          _
      $region12: #{tpu_custom_call.1} parent=5 // pred_fallthru
        _
      %p142 = scmp.lt.s32.totalorder %s13, 2
      // Predicated region
      $region21: #{tpu_custom_call.1} parent=5 // pred_check
        %p143 = pneg %p142
      $region22: #{tpu_custom_call.1} parent=5 // pred_check_branch
        %145 = sbr.rel (%p143) target = $region24
      $region23: #{tpu_custom_call.1} parent=5 // pred_region
        // Predicated region
        $region25: #{tpu_custom_call.1} parent=23 // pred_check
          %p146 = pneg %p47
        $region26: #{tpu_custom_call.1} parent=23 // pred_check_branch
          %148 = sbr.rel (%p146) target = $region28
        $region27: #{tpu_custom_call.1} parent=23 // pred_region
          #allocation7 [shape = 'u32[6]{0}', space=smem, size = 0x18, scoped, tag = 'DMA stride descriptor']
          %s149 = sand.u32 %s37, 1
          %s150 = scalar_lea.sflag [#allocation5], %s149
          %s151 = sand.u32 %s37, 1
          %s152 = smul.addr %s151, 64
          %s153 = scalar_lea.vmem [#allocation4], %s152
          %s154 = smul.u32 2, %s20
          %s155 = smul.u32 4, %s21
          %s157 = ssub.s32 1024, 1024
          %158 = vsyncadd %s150, %s157
          %s159 = smul.addr %s154, 8
          %s160 = sadd.s32 %s155, %s159
          %s161 = smul.addr %s160, 128
          %s162 = scalar_lea.hbm %s0, %s161
          %s164 = sshll.u32 1, 14
          %s165 = sxor.u32 4294967295, %s164
          %s167 = sld [smem:[#allocation0]]
          %s168 = sadd.s32 2, %s167
          %s170 = sshll.u32 7, 26
          %s171 = sxor.u32 4294967295, %s170
          %s172 = sand.u32 0, %s171
          %s173 = sshll.u32 %s168, 26
          %s174 = sor.u32 %s172, %s173
          %s175 = sshll.u32 %s153, 4
          %s176 = int_to_ptr.vmem [resolvable:$true] %s175
          %182 = sst [smem:[#allocation7]] 1024
          %s183 = scalar_lea.smem [#allocation7], 1
          %184 = sst [smem:[%s183]] 512
          %s185 = scalar_lea.smem [#allocation7], 2
          %186 = sst [smem:[%s185]] 4
          %s187 = scalar_lea.smem [#allocation7], 3
          %188 = sst [smem:[%s187]] 128
          %s189 = scalar_lea.smem [#allocation7], 4
          %190 = sst [smem:[%s189]] 128
          %s191 = scalar_lea.smem [#allocation7], 5
          %192 = sst [smem:[%s191]] 8
          %194 = dma.general %s162, 1024, %s176, %s150, 131072, [#allocation7], %s174, 0
        $region28: #{tpu_custom_call.1} parent=23 // pred_fallthru
          _
      $region24: #{tpu_custom_call.1} parent=5 // pred_fallthru
        _
      %p195 = scmp.le.s32.totalorder 1, %s13
      %p196 = scmp.lt.s32.totalorder %s13, 3
      %p197 = pnand %p195, %p196
      %p198 = pneg %p197
      // Predicated region
      $region29: #{tpu_custom_call.1} parent=5 // pred_check
        _
      $region30: #{tpu_custom_call.1} parent=5 // pred_check_branch
        %200 = sbr.rel (%p197) target = $region32
      $region31: #{tpu_custom_call.1} parent=5 // pred_region
        %s201 = ssub.s32 %s13, 1
        %s202 = sand.u32 %s40, 1
        %s203 = scalar_lea.sflag [#allocation5], %s202
        %s204 = sand.u32 %s40, 1
        %s205 = smul.addr %s204, 64
        %s206 = scalar_lea.vmem [#allocation4], %s205
        // Predicated region
        $region33: #{tpu_custom_call.1} parent=31 // pred_check
          %p207 = pneg %p53
        $region34: #{tpu_custom_call.1} parent=31 // pred_check_branch
          %209 = sbr.rel (%p207) target = $region36
        $region35: #{tpu_custom_call.1} parent=31 // pred_region
          %210 = dma.done %s203, 1024
        $region36: #{tpu_custom_call.1} parent=31 // pred_fallthru
          _
        %s211 = sand.u32 %s40, 1
        %s212 = scalar_lea.sflag [#allocation5], %s211
        %s213 = sand.u32 %s40, 1
        %s214 = smul.addr %s213, 64
        %s215 = scalar_lea.vmem [#allocation4], %s214
        %p216 = pneg %p53
        %p217 = pneg %p50
        %p218 = pneg %p74
        %p219 = pneg %p71
        %p220 = pneg %p95
        %p221 = pneg %p92
        %p222 = pneg %p121
        %p223 = pneg %p118
        %p224 = scmp.lt.s32.totalorder %s22, 0
        %s225 = scalar_select %p224, %s22, 0
        %s226 = smul.addr %s225, 2
        %s227 = scalar_lea.vmem %s3, %s226
        %s228 = smul.u32 2, %s22
        %s229 = smul.u32 4, %s23
        %p230 = scmp.lt.s32.totalorder %s22, 0
        %s231 = scalar_select %p230, %s22, 0
        %s232 = smul.addr %s231, 2
        %s233 = scalar_lea.vmem %s3, %s232
        %p234 = scmp.eq.s32.totalorder %s23, 0
        // Predicated region
        $region37: #{tpu_custom_call.1} parent=31 // pred_check
          %p235 = pneg %p234
        $region38: #{tpu_custom_call.1} parent=31 // pred_check_branch
          %237 = sbr.rel (%p235) target = $region40
        $region39: #{tpu_custom_call.1} parent=31 // pred_region
          %238 = vst [vmem:[#allocation2] sm:$0x3] 0.0
        $region40: #{tpu_custom_call.1} parent=31 // pred_fallthru
          _
        %v239 = vld [vmem:[#allocation2] sm:$0x3]
        %v240 = vld [vmem:[%s206] sm:$0xff]
        %v241 = vld [vmem:[%s206 + $0x20] sm:$0xff]
        %v242 = vrot.slane %v240, 4
        %v243 = vadd.f32 %v240, %v242
        %v244 = vrot.slane %v243, 2
        %v245 = vadd.f32 %v243, %v244
        %v246 = vrot.slane %v245, 1
        %v247 = vadd.f32 %v245, %v246
        %v248 = vrot.slane %v241, 4
        %v249 = vadd.f32 %v241, %v248
        %v250 = vrot.slane %v249, 2
        %v251 = vadd.f32 %v249, %v250
        %v252 = vrot.slane %v251, 1
        %v253 = vadd.f32 %v251, %v252
        %v254 = vadd.f32 %v247, 0.0
        %v255 = vadd.f32 %v253, 0.0
        %s256 = scalar_lea.vmem %s206, 8 [#allocation4]
        %v257 = vld [vmem:[%s256] sm:$0xff]
        %v258 = vld [vmem:[%s256 + $0x20] sm:$0xff]
        %v259 = vrot.slane %v257, 4
        %v260 = vadd.f32 %v257, %v259
        %v261 = vrot.slane %v260, 2
        %v262 = vadd.f32 %v260, %v261
        %v263 = vrot.slane %v262, 1
        %v264 = vadd.f32 %v262, %v263
        %v265 = vrot.slane %v258, 4
        %v266 = vadd.f32 %v258, %v265
        %v267 = vrot.slane %v266, 2
        %v268 = vadd.f32 %v266, %v267
        %v269 = vrot.slane %v268, 1
        %v270 = vadd.f32 %v268, %v269
        %v271 = vadd.f32 %v254, %v264
        %v272 = vadd.f32 %v255, %v270
        %s273 = scalar_lea.vmem %s206, 16 [#allocation4]
        %v274 = vld [vmem:[%s273] sm:$0xff]
        %v275 = vld [vmem:[%s273 + $0x20] sm:$0xff]
        %v276 = vrot.slane %v274, 4
        %v277 = vadd.f32 %v274, %v276
        %v278 = vrot.slane %v277, 2
        %v279 = vadd.f32 %v277, %v278
        %v280 = vrot.slane %v279, 1
        %v281 = vadd.f32 %v279, %v280
        %v282 = vrot.slane %v275, 4
        %v283 = vadd.f32 %v275, %v282
        %v284 = vrot.slane %v283, 2
        %v285 = vadd.f32 %v283, %v284
        %v286 = vrot.slane %v285, 1
        %v287 = vadd.f32 %v285, %v286
        %v288 = vadd.f32 %v271, %v281
        %v289 = vadd.f32 %v272, %v287
        %s290 = scalar_lea.vmem %s206, 24 [#allocation4]
        %v291 = vld [vmem:[%s290] sm:$0xff]
        %v292 = vld [vmem:[%s290 + $0x20] sm:$0xff]
        %v293 = vrot.slane %v291, 4
        %v294 = vadd.f32 %v291, %v293
        %v295 = vrot.slane %v294, 2
        %v296 = vadd.f32 %v294, %v295
        %v297 = vrot.slane %v296, 1
        %v298 = vadd.f32 %v296, %v297
        %v299 = vrot.slane %v292, 4
        %v300 = vadd.f32 %v292, %v299
        %v301 = vrot.slane %v300, 2
        %v302 = vadd.f32 %v300, %v301
        %v303 = vrot.slane %v302, 1
        %v304 = vadd.f32 %v302, %v303
        %v305 = vadd.f32 %v288, %v298
        %v306 = vadd.f32 %v289, %v304
        %vm309 = vcmask 1041409
        %v310 = vsel %vm309, %v306, %v305
        %v312 = vadd.f32 %v239, %v310
        %313 = vst [vmem:[#allocation2] sm:$0x3] %v312
        %p314 = scmp.eq.s32.totalorder %s23, 1
        // Predicated region
        $region41: #{tpu_custom_call.1} parent=31 // pred_check
          %p315 = pneg %p314
        $region42: #{tpu_custom_call.1} parent=31 // pred_check_branch
          %317 = sbr.rel (%p315) target = $region44
        $region43: #{tpu_custom_call.1} parent=31 // pred_region
          %v318 = vld [vmem:[#allocation2] sm:$0x3]
          %v319 = vld [vmem:[%s1] sm:$0x1]
          %v321 = vlaneseq
          %v322 = vshrl.u32 %v321, 7
          %v323 = vsub.s32 0, %v322
          %v324 = vrot.slane %v319, %v323
          %v326 = vmul.f32 %v318, %v324
          %vm327 = vcmask 1041408
          %v328 = vsel %vm327, %v326, 0.0
          %329 = vadd.xlane.f32.xlu0 %v328
          %v330 = vpop.xlane.xlu0 %329
          %s331 = sld [smem:[#allocation3]]
          %v332 = vstv %s331
          %v333 = vadd.f32 %v330, %v332
          %vm334 = vcmask 1024
          %335 = vst.msk [vmem:[%s233] sm:$0x3] %vm334, %v333
        $region44: #{tpu_custom_call.1} parent=31 // pred_fallthru
          _
        %p336 = scmp.lt.s32.totalorder %s22, 0
        %s337 = scalar_select %p336, %s22, 0
        %s338 = smul.addr %s337, 2
        %s339 = scalar_lea.vmem %s3, %s338
        // Predicated region
        $region45: #{tpu_custom_call.1} parent=31 // pred_check
          %p340 = pneg %p118
        $region46: #{tpu_custom_call.1} parent=31 // pred_check_branch
          %342 = sbr.rel (%p340) target = $region48
        $region47: #{tpu_custom_call.1} parent=31 // pred_region
          _
        $region48: #{tpu_custom_call.1} parent=31 // pred_fallthru
          _
        // Predicated region
        $region49: #{tpu_custom_call.1} parent=31 // pred_check
          %p343 = pneg %p118
        $region50: #{tpu_custom_call.1} parent=31 // pred_check_branch
          %345 = sbr.rel (%p343) target = $region52
        $region51: #{tpu_custom_call.1} parent=31 // pred_region
          %p346 = scmp.lt.s32.totalorder %s22, 0
          %s347 = scalar_select %p346, %s22, 0
          %s348 = smul.addr %s347, 2
          %s349 = scalar_lea.vmem %s3, %s348
        $region52: #{tpu_custom_call.1} parent=31 // pred_fallthru
          _
      $region32: #{tpu_custom_call.1} parent=5 // pred_fallthru
        _
      %p350 = scmp.le.s32.totalorder 2, %s13
      // Predicated region
      $region53: #{tpu_custom_call.1} parent=5 // pred_check
        %p351 = pneg %p350
      $region54: #{tpu_custom_call.1} parent=5 // pred_check_branch
        %353 = sbr.rel (%p351) target = $region56
      $region55: #{tpu_custom_call.1} parent=5 // pred_region
        %s354 = ssub.s32 %s13, 2
      $region56: #{tpu_custom_call.1} parent=5 // pred_fallthru
        _
    $region6: #{tpu_custom_call.1} parent=1 // loop_footer
      %s17 = sadd.s32 1, %s13
    $region7: #{tpu_custom_call.1} parent=1 // loop_footer_branch
      %12 = sbr.rel target = $region3
    $region8: #{tpu_custom_call.1} parent=1 // loop_exit
      _
    %355 = vsyncpa [#allocation5], 1
    %s356 = scalar_lea.sflag [#allocation5], 1
    %357 = vsyncpa %s356, 1

</llo_original>
